<compile_context>
chip_gen: v7x
topology: tpu7x:2x2x1
jax: 0.10.0
libtpu: 0.0.40
codegen_flags: <defaults>
</compile_context>

<pallas_src>
import math
import functools

import jax
import jax.numpy as jnp
from jax.experimental import pallas as pl
from jax.experimental.pallas import tpu as pltpu


_LANE = 128
_SUBLANE = 8
_VMEM_LIMIT = 32 * 1024 * 1024   # explicit scoped-VMEM cap (safe on v5e/v6e/v7x)


def _round_up(x, m):
    return (x + m - 1) // m * m


# --------------------------------------------------------------------------
# Pallas kernels
# --------------------------------------------------------------------------

def _eca_fused_kernel(x_ref, w_ref, o_ref, *, inv_hw):
    """Pool -> gate -> scale in one pass.  Block: (TR rows, full padded HW)."""
    x = x_ref[...]                                            # (TR, HWp) f32
    pooled = jnp.sum(x, axis=-1, keepdims=True) * inv_hw      # (TR, 1)  XLU reduce
    gate = jax.nn.sigmoid(pooled * w_ref[...])                # (TR, 1)  EUP
    o_ref[...] = x * gate                                     # lane-dense store


def _eca_pool_gate_kernel(x_ref, w_ref, g_ref, acc_ref, *, inv_hw):
    """Two-pass path, pass 1: accumulate spatial sum over the HW grid axis,
    finalize the sigmoid gate on the last HW tile."""
    @pl.when(pl.program_id(1) == 0)
    def _():
        acc_ref[...] = jnp.zeros_like(acc_ref)

    acc_ref[...] += jnp.sum(x_ref[...], axis=-1, keepdims=True)

    @pl.when(pl.program_id(1) == pl.num_programs(1) - 1)
    def _():
        g_ref[...] = jax.nn.sigmoid(acc_ref[...] * inv_hw * w_ref[...])


def _eca_scale_kernel(x_ref, g_ref, o_ref):
    """Two-pass path, pass 2: broadcast the per-row gate over the HW tile."""
    o_ref[...] = x_ref[...] * g_ref[...]


# --------------------------------------------------------------------------
# Forward
# --------------------------------------------------------------------------

def eca_forward(x, w, *, vmem_tile_budget_bytes=4 << 20, force_two_pass=False):
    """ECABlock forward.

    x: (N, C, H, W) float32
    w: (C, 1, k) depthwise Conv1d weight (groups=C, no bias)
    """
    N, C, H, W = x.shape
    k = w.shape[-1]
    pad = (k - 1) // 2
    # The Conv1d input is a length-1 signal zero-padded to length k; every tap
    # except the centre one multiplies a padded zero, so the depthwise conv is
    # EXACTLY a per-channel scalar multiply by w[:, 0, pad].
    w_center = w[:, 0, pad].astype(jnp.float32)               # (C,)

    rows = N * C
    HW = H * W
    HWp = _round_up(HW, _LANE)
    inv_hw = 1.0 / float(HW)

    # Channels-major slab: free reshape of contiguous NCHW; HW goes on lanes.
    x2 = x.reshape(rows, HW).astype(jnp.float32)
    if HWp != HW:
        x2 = jnp.pad(x2, ((0, 0), (0, HWp - HW)))             # zeros: sum unaffected
    wrow = jnp.tile(w_center, N).reshape(rows, 1)

    fused_ok = (not force_two_pass) and (16 * HWp * _SUBLANE <= vmem_tile_budget_bytes)

    if fused_ok:
        # Rows per tile: as many as the budget allows (in+out, double-buffered
        # => ~16 bytes per element), but keep >=2 grid steps when possible so
        # the "parallel" axis can shard across both v7x TensorCores.
        cap = max(_SUBLANE,
                  (vmem_tile_budget_bytes // (16 * HWp)) // _SUBLANE * _SUBLANE)
        tr = min(cap, _round_up(rows, _SUBLANE))
        if tr >= rows and rows >= 2 * _SUBLANE:
            tr = max(_SUBLANE, (rows // 2) // _SUBLANE * _SUBLANE)
        rows_p = _round_up(rows, tr)
        if rows_p != rows:
            x2 = jnp.pad(x2, ((0, rows_p - rows), (0, 0)))
            wrow = jnp.pad(wrow, ((0, rows_p - rows), (0, 0)))

        out = pl.pallas_call(
            functools.partial(_eca_fused_kernel, inv_hw=inv_hw),
            out_shape=jax.ShapeDtypeStruct((rows_p, HWp), jnp.float32),
            grid=(rows_p // tr,),
            in_specs=[pl.BlockSpec((tr, HWp), lambda i: (i, 0)),
                      pl.BlockSpec((tr, 1), lambda i: (i, 0))],
            out_specs=pl.BlockSpec((tr, HWp), lambda i: (i, 0)),
            compiler_params=pltpu.CompilerParams(
                dimension_semantics=("parallel",),
                vmem_limit_bytes=_VMEM_LIMIT),
        )(x2, wrow)
    else:
        # ----- tiled two-pass path for large spatial extents -----
        tr = min(_SUBLANE * 4, _round_up(rows, _SUBLANE))
        thw = max(_LANE,
                  min(HWp, (vmem_tile_budget_bytes // (16 * tr)) // _LANE * _LANE))
        HWp2 = _round_up(HWp, thw)
        if HWp2 != HWp:
            x2 = jnp.pad(x2, ((0, 0), (0, HWp2 - HWp)))
            HWp = HWp2
        rows_p = _round_up(rows, tr)
        if rows_p != rows:
            x2 = jnp.pad(x2, ((0, rows_p - rows), (0, 0)))
            wrow = jnp.pad(wrow, ((0, rows_p - rows), (0, 0)))
        n_r, n_hw = rows_p // tr, HWp // thw

        gate = pl.pallas_call(
            functools.partial(_eca_pool_gate_kernel, inv_hw=inv_hw),
            out_shape=jax.ShapeDtypeStruct((rows_p, 1), jnp.float32),
            grid=(n_r, n_hw),
            in_specs=[pl.BlockSpec((tr, thw), lambda i, j: (i, j)),
                      pl.BlockSpec((tr, 1), lambda i, j: (i, 0))],
            out_specs=pl.BlockSpec((tr, 1), lambda i, j: (i, 0)),
            scratch_shapes=[pltpu.VMEM((tr, 1), jnp.float32)],
            compiler_params=pltpu.CompilerParams(
                dimension_semantics=("parallel", "arbitrary"),
                vmem_limit_bytes=_VMEM_LIMIT),
        )(x2, wrow)

        out = pl.pallas_call(
            _eca_scale_kernel,
            out_shape=jax.ShapeDtypeStruct((rows_p, HWp), jnp.float32),
            grid=(n_r, n_hw),
            in_specs=[pl.BlockSpec((tr, thw), lambda i, j: (i, j)),
                      pl.BlockSpec((tr, 1), lambda i, j: (i, 0))],
            out_specs=pl.BlockSpec((tr, thw), lambda i, j: (i, j)),
            compiler_params=pltpu.CompilerParams(
                dimension_semantics=("parallel", "parallel"),
                vmem_limit_bytes=_VMEM_LIMIT),
        )(x2, gate)

    out = out[:rows, :HW].reshape(N, C, H, W)
    return out.astype(x.dtype)


# --------------------------------------------------------------------------
# Reference (pure JAX, mirrors the PyTorch forward) and init helpers
# --------------------------------------------------------------------------

def eca_kernel_size(channels, gamma=2, b=1):
    ks = int(abs((math.log2(channels) + b) / gamma))
    return ks if ks % 2 else ks + 1


def eca_reference(x, w):
    N, C, H, W = x.shape
    k = w.shape[-1]
    pad = (k - 1) // 2
    y = jnp.mean(x, axis=(2, 3))                                  # (N, C)
    yp = jnp.pad(y[:, :, None], ((0, 0), (0, 0), (pad, pad)))     # (N, C, k)
    out = jnp.zeros((N, C), jnp.float32)
    for t in range(k):
        out = out + w[None, :, 0, t] * yp[:, :, t]
    gate = jax.nn.sigmoid(out)
    return x * gate[:, :, None, None]


# --------------------------------------------------------------------------

if __name__ == "__main__":
    root = jax.random.PRNGKey(0)

    def make_case(key, N, C, H, W):
        wk, xk = jax.random.split(key)
        k = eca_kernel_size(C)
        bound = math.sqrt(6.0 / k)        # kaiming_uniform, fan_in = k (groups=C)
        w = jax.random.uniform(wk, (C, 1, k), jnp.float32, -bound, bound)
        x = jax.random.uniform(xk, (N, C, H, W), jnp.float32)
        return x, w

    k1, k2 = jax.random.split(root)

    # Primary case: fused single-pass kernel.
    x, w = make_case(k1, 2, 32, 16, 16)
    out = jax.block_until_ready(jax.jit(eca_forward)(x, w))
    assert out.shape == (2, 32, 16, 16), out.shape
    assert bool(jnp.all(jnp.isfinite(out)))
    ref = eca_reference(x, w)
    assert jnp.allclose(out, ref, atol=1e-5, rtol=1e-5)

    # Same case forced onto the tiled two-pass path (exercises the HW-tiled
    # accumulator kernel that large images would take).
    out2 = jax.block_until_ready(
        jax.jit(functools.partial(eca_forward, force_two_pass=True,
                                  vmem_tile_budget_bytes=64 * 1024))(x, w))
    assert jnp.allclose(out2, ref, atol=1e-5, rtol=1e-5)

    # Ragged case: rows and lanes both need padding to (8, 128) multiples.
    x3, w3 = make_case(k2, 1, 20, 10, 13)
    ref3 = eca_reference(x3, w3)
    out3 = jax.block_until_ready(jax.jit(eca_forward)(x3, w3))
    assert jnp.allclose(out3, ref3, atol=1e-5, rtol=1e-5)
    out4 = jax.block_until_ready(
        jax.jit(functools.partial(eca_forward, force_two_pass=True))(x3, w3))
    assert jnp.allclose(out4, ref3, atol=1e-5, rtol=1e-5)

    print("KERNEL_OK")
</pallas_src>

<mosaic_0001>
module attributes {stable_mosaic.version = 11 : i64} {
  func.func @_eca_fused_kernel(%arg0: i32, %arg1: memref<32x256xf32, #tpu.memory_space<vmem>>, %arg2: memref<32x1xf32, #tpu.memory_space<vmem>>, %arg3: memref<32x256xf32, #tpu.memory_space<vmem>>) attributes {dimension_semantics = [#tpu.dimension_semantics<parallel>], iteration_bounds = array<i64: 2>, scalar_prefetch = 0 : i64, scratch_operands = 0 : i64, tpu.core_type = #tpu.core_type<tc>, window_params = [{transform_indices = @transform_0, window_bounds = array<i64: 32, 256>}, {transform_indices = @transform_1, window_bounds = array<i64: 32, 1>}, {transform_indices = @transform_2, window_bounds = array<i64: 32, 256>}]} {
    %c0 = arith.constant 0 : index
    %c0_0 = arith.constant 0 : index
    %0 = vector.load %arg1[%c0, %c0_0] : memref<32x256xf32, #tpu.memory_space<vmem>>, vector<32x256xf32>
    %cst = arith.constant dense<0.000000e+00> : vector<32xf32>
    %1 = vector.multi_reduction <add>, %0, %cst [1] : vector<32x256xf32> to vector<32xf32>
    %2 = vector.shape_cast %1 : vector<32xf32> to vector<32x1xf32>
    %cst_1 = arith.constant 3.906250e-03 : f32
    %3 = vector.broadcast %cst_1 : f32 to vector<32x1xf32>
    %4 = arith.mulf %2, %3 : vector<32x1xf32>
    %c0_2 = arith.constant 0 : index
    %c0_3 = arith.constant 0 : index
    %5 = vector.load %arg2[%c0_2, %c0_3] : memref<32x1xf32, #tpu.memory_space<vmem>>, vector<32x1xf32>
    %6 = arith.mulf %4, %5 : vector<32x1xf32>
    %7 = arith.negf %6 : vector<32x1xf32>
    %8 = math.exp %7 : vector<32x1xf32>
    %cst_4 = arith.constant 1.000000e+00 : f32
    %9 = vector.broadcast %cst_4 : f32 to vector<32x1xf32>
    %10 = arith.addf %9, %8 : vector<32x1xf32>
    %11 = arith.divf %9, %10 : vector<32x1xf32>
    %12 = vector.broadcast %11 : vector<32x1xf32> to vector<32x256xf32>
    %13 = arith.mulf %0, %12 : vector<32x256xf32>
    %c0_5 = arith.constant 0 : index
    %c0_6 = arith.constant 0 : index
    %14 = vector.load %arg3[%c0_5, %c0_6] : memref<32x256xf32, #tpu.memory_space<vmem>>, vector<32x256xf32>
    tpu.vector_store %arg3[%c0_5, %c0_6], %13 {strides = array<i32>} : memref<32x256xf32, #tpu.memory_space<vmem>>, vector<32x256xf32>,
    return
  }
  func.func @transform_0(%arg0: i32) -> (i32, i32) {
    %c0_i32 = arith.constant 0 : i32
    %c0_i32_0 = arith.constant 0 : i32
    return %arg0, %c0_i32 : i32, i32
  }
  func.func @transform_1(%arg0: i32) -> (i32, i32) {
    %c0_i32 = arith.constant 0 : i32
    %c0_i32_0 = arith.constant 0 : i32
    return %arg0, %c0_i32 : i32, i32
  }
  func.func @transform_2(%arg0: i32) -> (i32, i32) {
    %c0_i32 = arith.constant 0 : i32
    %c0_i32_0 = arith.constant 0 : i32
    return %arg0, %c0_i32 : i32, i32
  }
}

</mosaic_0001>

<llo_original>
// kernel: tile.6
$region0: #{tile.6}
  #allocation0 [shape = 's32[1]{0}', space=sflag, size = 0x4, scoped, tag = 'scoped memory for tile.6']
  %s0 = inlined_call_operand.vmem [shape: f32[32], index: 0, kind: input, shape index: {}]
  %s1 = inlined_call_operand.vmem [shape: f32[2,32], index: 1, kind: output, shape index: {}]
  // Predicated region
  $region2: #{tile.6} parent=0 // pred_check
    _
  $region3: #{tile.6} parent=0 // pred_check_branch
    %3 = sbr.rel (0) target = $region5
  $region4: #{tile.6} parent=0 // pred_region
    _
  $region5: #{tile.6} parent=0 // pred_fallthru
    _
  %v4 = vld [vmem:[%s0] ss:$0 sm:$0xff]
  %5 = vst [vmem:[%s1] sm:$0x3] %v4

// kernel: tile.0
$region0: #{tile.0}
  %s0 = inlined_call_operand.vmem [shape: f32[2,32], index: 0, kind: input, shape index: {}]
  %s1 = inlined_call_operand.vmem [shape: f32[64,1], index: 1, kind: output, shape index: {}]
  $region1: #{tile.0} parent=0
    #allocation0 [shape = 'u8[4096]{0}', space=vmem, size = 0x1000, scoped, tag = 'scoped mem for input reshape']
    %s3 = sshllo.u32 0, 2
    %v4 = vld [vmem:[%s0] sm:%s3]
    %5 = vst [vmem:[#allocation0] sm:%s3] %v4
    %v6 = vld [vmem:[#allocation0] sm:$0x3]
    %vm7 = vcmask 7168
    %8 = vst.msk [vmem:[%s1] sm:$0x1] %vm7, %v6
    %s9 = scalar_lea.vmem %s1, 31
    %10 = vst.msk [vmem:[%s9] sm:$0x2] %vm7, %v6
    %v11 = vld [vmem:[#allocation0] sm:$0x3]
    %12 = vrot.lane.b32.xlu0 %v11, 127
    %v13 = vpop.permute.xlu0 %12
    %vm14 = vcmask 7168
    %s15 = scalar_lea.vmem %s1, 1
    %16 = vst.msk [vmem:[%s15] sm:$0x1] %vm14, %v13
    %s17 = scalar_lea.vmem %s1, 32
    %18 = vst.msk [vmem:[%s17] sm:$0x2] %vm14, %v13
    %v19 = vld [vmem:[#allocation0] sm:$0x3]
    %20 = vrot.lane.b32.xlu0 %v19, 126
    %v21 = vpop.permute.xlu0 %20
    %vm22 = vcmask 7168
    %s23 = scalar_lea.vmem %s1, 2
    %24 = vst.msk [vmem:[%s23] sm:$0x1] %vm22, %v21
    %s25 = scalar_lea.vmem %s1, 33
    %26 = vst.msk [vmem:[%s25] sm:$0x2] %vm22, %v21
    %v27 = vld [vmem:[#allocation0] sm:$0x3]
    %28 = vrot.lane.b32.xlu0 %v27, 125
    %v29 = vpop.permute.xlu0 %28
    %vm30 = vcmask 7168
    %s31 = scalar_lea.vmem %s1, 3
    %32 = vst.msk [vmem:[%s31] sm:$0x1] %vm30, %v29
    %s33 = scalar_lea.vmem %s1, 34
    %34 = vst.msk [vmem:[%s33] sm:$0x2] %vm30, %v29
    %v35 = vld [vmem:[#allocation0] sm:$0x3]
    %36 = vrot.lane.b32.xlu0 %v35, 124
    %v37 = vpop.permute.xlu0 %36
    %vm38 = vcmask 7168
    %s39 = scalar_lea.vmem %s1, 4
    %40 = vst.msk [vmem:[%s39] sm:$0x1] %vm38, %v37
    %s41 = scalar_lea.vmem %s1, 35
    %42 = vst.msk [vmem:[%s41] sm:$0x2] %vm38, %v37
    %v43 = vld [vmem:[#allocation0] sm:$0x3]
    %44 = vrot.lane.b32.xlu0 %v43, 123
    %v45 = vpop.permute.xlu0 %44
    %vm46 = vcmask 7168
    %s47 = scalar_lea.vmem %s1, 5
    %48 = vst.msk [vmem:[%s47] sm:$0x1] %vm46, %v45
    %s49 = scalar_lea.vmem %s1, 36
    %50 = vst.msk [vmem:[%s49] sm:$0x2] %vm46, %v45
    %v51 = vld [vmem:[#allocation0] sm:$0x3]
    %52 = vrot.lane.b32.xlu0 %v51, 122
    %v53 = vpop.permute.xlu0 %52
    %vm54 = vcmask 7168
    %s55 = scalar_lea.vmem %s1, 6
    %56 = vst.msk [vmem:[%s55] sm:$0x1] %vm54, %v53
    %s57 = scalar_lea.vmem %s1, 37
    %58 = vst.msk [vmem:[%s57] sm:$0x2] %vm54, %v53
    %v59 = vld [vmem:[#allocation0] sm:$0x3]
    %60 = vrot.lane.b32.xlu0 %v59, 121
    %v61 = vpop.permute.xlu0 %60
    %vm62 = vcmask 7168
    %s63 = scalar_lea.vmem %s1, 7
    %64 = vst.msk [vmem:[%s63] sm:$0x1] %vm62, %v61
    %s65 = scalar_lea.vmem %s1, 38
    %66 = vst.msk [vmem:[%s65] sm:$0x2] %vm62, %v61
    %v67 = vld [vmem:[#allocation0] sm:$0x3]
    %68 = vrot.lane.b32.xlu0 %v67, 120
    %v69 = vpop.permute.xlu0 %68
    %vm70 = vcmask 7168
    %s71 = scalar_lea.vmem %s1, 8
    %72 = vst.msk [vmem:[%s71] sm:$0x1] %vm70, %v69
    %s73 = scalar_lea.vmem %s1, 39
    %74 = vst.msk [vmem:[%s73] sm:$0x2] %vm70, %v69
    %v75 = vld [vmem:[#allocation0] sm:$0x3]
    %76 = vrot.lane.b32.xlu0 %v75, 119
    %v77 = vpop.permute.xlu0 %76
    %vm78 = vcmask 7168
    %s79 = scalar_lea.vmem %s1, 9
    %80 = vst.msk [vmem:[%s79] sm:$0x1] %vm78, %v77
    %s81 = scalar_lea.vmem %s1, 40
    %82 = vst.msk [vmem:[%s81] sm:$0x2] %vm78, %v77
    %v83 = vld [vmem:[#allocation0] sm:$0x3]
    %84 = vrot.lane.b32.xlu0 %v83, 118
    %v85 = vpop.permute.xlu0 %84
    %vm86 = vcmask 7168
    %s87 = scalar_lea.vmem %s1, 10
    %88 = vst.msk [vmem:[%s87] sm:$0x1] %vm86, %v85
    %s89 = scalar_lea.vmem %s1, 41
    %90 = vst.msk [vmem:[%s89] sm:$0x2] %vm86, %v85
    %v91 = vld [vmem:[#allocation0] sm:$0x3]
    %92 = vrot.lane.b32.xlu0 %v91, 117
    %v93 = vpop.permute.xlu0 %92
    %vm94 = vcmask 7168
    %s95 = scalar_lea.vmem %s1, 11
    %96 = vst.msk [vmem:[%s95] sm:$0x1] %vm94, %v93
    %s97 = scalar_lea.vmem %s1, 42
    %98 = vst.msk [vmem:[%s97] sm:$0x2] %vm94, %v93
    %v99 = vld [vmem:[#allocation0] sm:$0x3]
    %100 = vrot.lane.b32.xlu0 %v99, 116
    %v101 = vpop.permute.xlu0 %100
    %vm102 = vcmask 7168
    %s103 = scalar_lea.vmem %s1, 12
    %104 = vst.msk [vmem:[%s103] sm:$0x1] %vm102, %v101
    %s105 = scalar_lea.vmem %s1, 43
    %106 = vst.msk [vmem:[%s105] sm:$0x2] %vm102, %v101
    %v107 = vld [vmem:[#allocation0] sm:$0x3]
    %108 = vrot.lane.b32.xlu0 %v107, 115
    %v109 = vpop.permute.xlu0 %108
    %vm110 = vcmask 7168
    %s111 = scalar_lea.vmem %s1, 13
    %112 = vst.msk [vmem:[%s111] sm:$0x1] %vm110, %v109
    %s113 = scalar_lea.vmem %s1, 44
    %114 = vst.msk [vmem:[%s113] sm:$0x2] %vm110, %v109
    %v115 = vld [vmem:[#allocation0] sm:$0x3]
    %116 = vrot.lane.b32.xlu0 %v115, 114
    %v117 = vpop.permute.xlu0 %116
    %vm118 = vcmask 7168
    %s119 = scalar_lea.vmem %s1, 14
    %120 = vst.msk [vmem:[%s119] sm:$0x1] %vm118, %v117
    %s121 = scalar_lea.vmem %s1, 45
    %122 = vst.msk [vmem:[%s121] sm:$0x2] %vm118, %v117
    %v123 = vld [vmem:[#allocation0] sm:$0x3]
    %124 = vrot.lane.b32.xlu0 %v123, 113
    %v125 = vpop.permute.xlu0 %124
    %vm126 = vcmask 7168
    %s127 = scalar_lea.vmem %s1, 15
    %128 = vst.msk [vmem:[%s127] sm:$0x1] %vm126, %v125
    %s129 = scalar_lea.vmem %s1, 46
    %130 = vst.msk [vmem:[%s129] sm:$0x2] %vm126, %v125
    %v131 = vld [vmem:[#allocation0] sm:$0x3]
    %132 = vrot.lane.b32.xlu0 %v131, 112
    %v133 = vpop.permute.xlu0 %132
    %vm134 = vcmask 7168
    %s135 = scalar_lea.vmem %s1, 16
    %136 = vst.msk [vmem:[%s135] sm:$0x1] %vm134, %v133
    %s137 = scalar_lea.vmem %s1, 47
    %138 = vst.msk [vmem:[%s137] sm:$0x2] %vm134, %v133
    %v139 = vld [vmem:[#allocation0] sm:$0x3]
    %140 = vrot.lane.b32.xlu0 %v139, 111
    %v141 = vpop.permute.xlu0 %140
    %vm142 = vcmask 7168
    %s143 = scalar_lea.vmem %s1, 17
    %144 = vst.msk [vmem:[%s143] sm:$0x1] %vm142, %v141
    %s145 = scalar_lea.vmem %s1, 48
    %146 = vst.msk [vmem:[%s145] sm:$0x2] %vm142, %v141
    %v147 = vld [vmem:[#allocation0] sm:$0x3]
    %148 = vrot.lane.b32.xlu0 %v147, 110
    %v149 = vpop.permute.xlu0 %148
    %vm150 = vcmask 7168
    %s151 = scalar_lea.vmem %s1, 18
    %152 = vst.msk [vmem:[%s151] sm:$0x1] %vm150, %v149
    %s153 = scalar_lea.vmem %s1, 49
    %154 = vst.msk [vmem:[%s153] sm:$0x2] %vm150, %v149
    %v155 = vld [vmem:[#allocation0] sm:$0x3]
    %156 = vrot.lane.b32.xlu0 %v155, 109
    %v157 = vpop.permute.xlu0 %156
    %vm158 = vcmask 7168
    %s159 = scalar_lea.vmem %s1, 19
    %160 = vst.msk [vmem:[%s159] sm:$0x1] %vm158, %v157
    %s161 = scalar_lea.vmem %s1, 50
    %162 = vst.msk [vmem:[%s161] sm:$0x2] %vm158, %v157
    %v163 = vld [vmem:[#allocation0] sm:$0x3]
    %164 = vrot.lane.b32.xlu0 %v163, 108
    %v165 = vpop.permute.xlu0 %164
    %vm166 = vcmask 7168
    %s167 = scalar_lea.vmem %s1, 20
    %168 = vst.msk [vmem:[%s167] sm:$0x1] %vm166, %v165
    %s169 = scalar_lea.vmem %s1, 51
    %170 = vst.msk [vmem:[%s169] sm:$0x2] %vm166, %v165
    %v171 = vld [vmem:[#allocation0] sm:$0x3]
    %172 = vrot.lane.b32.xlu0 %v171, 107
    %v173 = vpop.permute.xlu0 %172
    %vm174 = vcmask 7168
    %s175 = scalar_lea.vmem %s1, 21
    %176 = vst.msk [vmem:[%s175] sm:$0x1] %vm174, %v173
    %s177 = scalar_lea.vmem %s1, 52
    %178 = vst.msk [vmem:[%s177] sm:$0x2] %vm174, %v173
    %v179 = vld [vmem:[#allocation0] sm:$0x3]
    %180 = vrot.lane.b32.xlu0 %v179, 106
    %v181 = vpop.permute.xlu0 %180
    %vm182 = vcmask 7168
    %s183 = scalar_lea.vmem %s1, 22
    %184 = vst.msk [vmem:[%s183] sm:$0x1] %vm182, %v181
    %s185 = scalar_lea.vmem %s1, 53
    %186 = vst.msk [vmem:[%s185] sm:$0x2] %vm182, %v181
    %v187 = vld [vmem:[#allocation0] sm:$0x3]
    %188 = vrot.lane.b32.xlu0 %v187, 105
    %v189 = vpop.permute.xlu0 %188
    %vm190 = vcmask 7168
    %s191 = scalar_lea.vmem %s1, 23
    %192 = vst.msk [vmem:[%s191] sm:$0x1] %vm190, %v189
    %s193 = scalar_lea.vmem %s1, 54
    %194 = vst.msk [vmem:[%s193] sm:$0x2] %vm190, %v189
    %v195 = vld [vmem:[#allocation0] sm:$0x3]
    %196 = vrot.lane.b32.xlu0 %v195, 104
    %v197 = vpop.permute.xlu0 %196
    %vm198 = vcmask 7168
    %s199 = scalar_lea.vmem %s1, 24
    %200 = vst.msk [vmem:[%s199] sm:$0x1] %vm198, %v197
    %s201 = scalar_lea.vmem %s1, 55
    %202 = vst.msk [vmem:[%s201] sm:$0x2] %vm198, %v197
    %v203 = vld [vmem:[#allocation0] sm:$0x3]
    %204 = vrot.lane.b32.xlu0 %v203, 103
    %v205 = vpop.permute.xlu0 %204
    %vm206 = vcmask 7168
    %s207 = scalar_lea.vmem %s1, 25
    %208 = vst.msk [vmem:[%s207] sm:$0x1] %vm206, %v205
    %s209 = scalar_lea.vmem %s1, 56
    %210 = vst.msk [vmem:[%s209] sm:$0x2] %vm206, %v205
    %v211 = vld [vmem:[#allocation0] sm:$0x3]
    %212 = vrot.lane.b32.xlu0 %v211, 102
    %v213 = vpop.permute.xlu0 %212
    %vm214 = vcmask 7168
    %s215 = scalar_lea.vmem %s1, 26
    %216 = vst.msk [vmem:[%s215] sm:$0x1] %vm214, %v213
    %s217 = scalar_lea.vmem %s1, 57
    %218 = vst.msk [vmem:[%s217] sm:$0x2] %vm214, %v213
    %v219 = vld [vmem:[#allocation0] sm:$0x3]
    %220 = vrot.lane.b32.xlu0 %v219, 101
    %v221 = vpop.permute.xlu0 %220
    %vm222 = vcmask 7168
    %s223 = scalar_lea.vmem %s1, 27
    %224 = vst.msk [vmem:[%s223] sm:$0x1] %vm222, %v221
    %s225 = scalar_lea.vmem %s1, 58
    %226 = vst.msk [vmem:[%s225] sm:$0x2] %vm222, %v221
    %v227 = vld [vmem:[#allocation0] sm:$0x3]
    %228 = vrot.lane.b32.xlu0 %v227, 100
    %v229 = vpop.permute.xlu0 %228
    %vm230 = vcmask 7168
    %s231 = scalar_lea.vmem %s1, 28
    %232 = vst.msk [vmem:[%s231] sm:$0x1] %vm230, %v229
    %s233 = scalar_lea.vmem %s1, 59
    %234 = vst.msk [vmem:[%s233] sm:$0x2] %vm230, %v229
    %v235 = vld [vmem:[#allocation0] sm:$0x3]
    %236 = vrot.lane.b32.xlu0 %v235, 99
    %v237 = vpop.permute.xlu0 %236
    %vm238 = vcmask 7168
    %s239 = scalar_lea.vmem %s1, 29
    %240 = vst.msk [vmem:[%s239] sm:$0x1] %vm238, %v237
    %s241 = scalar_lea.vmem %s1, 60
    %242 = vst.msk [vmem:[%s241] sm:$0x2] %vm238, %v237
    %v243 = vld [vmem:[#allocation0] sm:$0x3]
    %244 = vrot.lane.b32.xlu0 %v243, 98
    %v245 = vpop.permute.xlu0 %244
    %vm246 = vcmask 7168
    %s247 = scalar_lea.vmem %s1, 30
    %248 = vst.msk [vmem:[%s247] sm:$0x1] %vm246, %v245
    %s249 = scalar_lea.vmem %s1, 61
    %250 = vst.msk [vmem:[%s249] sm:$0x2] %vm246, %v245
    %v251 = vld [vmem:[#allocation0] sm:$0x3]
    %252 = vrot.lane.b32.xlu0 %v251, 97
    %v253 = vpop.permute.xlu0 %252
    %vm254 = vcmask 7168
    %s255 = scalar_lea.vmem %s1, 31
    %256 = vst.msk [vmem:[%s255] sm:$0x1] %vm254, %v253
    %s257 = scalar_lea.vmem %s1, 62
    %258 = vst.msk [vmem:[%s257] sm:$0x2] %vm254, %v253

// kernel: eca_forward.1
$region0: #{eca_forward.1}
  #allocation0 [shape = 'u32[]', space=smem, size = 0x4, offset = 0x4, fixed_abs, tag = 'smem constant byte address 0x4 - core index']
  #allocation1 [shape = 'u32[144,128]{1,0:T(1,128)}', space=vmem, size = 0x12000, scoped, tag = 'internal scratch']
  %s0 = inlined_call_operand.vmem [shape: f32[64,256], index: 0, kind: input, shape index: {}]
  %s1 = inlined_call_operand.vmem [shape: f32[64,1], index: 1, kind: input, shape index: {}]
  %s2 = inlined_call_operand.vmem [shape: f32[64,256], index: 2, kind: output, shape index: {}]
  %s3 = sld [smem:[#allocation0]]
  $region41: #{eca_forward.1} parent=0
    _
  %s5 = ssub.s32 1, %s3
  %s6 = scalar_select 0, %s5, %s3
  loop: start=0, step=1, limit=4
  $region2: #{eca_forward.1} parent=0 // loop_pre_header
    _
  $region3: #{eca_forward.1} parent=0 // loop_header
    %s8 = sphi 0, %s12
    %p9 = scmp.ge.s32.totalorder %s8, 4
    %s18 = sphi 0, %s20
    %s21 = sphi 0, %s18
    %s22 = sphi 0, %s21
    %s38 = sphi 0, %s22
    %s44 = sphi 0, %s46
    %s47 = sphi 0, %s44
    %s48 = sphi 0, %s47
    %s64 = sphi 0, %s48
    %s70 = sphi 0, %s72
    %s73 = sphi 0, %s70
    %s74 = sphi 0, %s73
    %s90 = sphi 0, %s74
  $region4: #{eca_forward.1} parent=0 // loop_header_branch
    %11 = sbr.rel (%p9) target = $region8
  $region5: #{eca_forward.1} parent=0 // loop_body
    %s13 = ssub.s32 %s8, 1
    %s14 = ssub.s32 %s8, 2
    %s15 = sadd.s32 %s8, 1
    %s16 = ssub.s32 %s8, %s15
    %p17 = scmp.eq.s32.totalorder %s16, 0
    %s19 = sadd.s32 %s18, 1
    %s20 = scalar_select %p17, %s18, %s19
    %p23 = pneg %p17
    %p24 = scmp.eq.s32.totalorder %s8, 1
    %p25 = por %p23, %p24
    %p26 = scmp.ne.s32.totalorder %s18, %s21
    %p27 = scmp.eq.s32.totalorder %s8, 0
    %p28 = por %p26, %p27
    %p29 = scmp.ne.s32.totalorder %s18, %s21
    %p30 = scmp.eq.s32.totalorder %s13, 1
    %p31 = por %p29, %p30
    %p32 = scmp.ne.s32.totalorder %s21, %s22
    %p33 = scmp.eq.s32.totalorder %s13, 0
    %p34 = por %p32, %p33
    %p35 = scmp.ne.s32.totalorder %s21, %s22
    %p36 = scmp.eq.s32.totalorder %s14, 1
    %p37 = por %p35, %p36
    %p39 = scmp.ne.s32.totalorder %s22, %s38
    %p40 = scmp.eq.s32.totalorder %s14, 0
    %p41 = por %p39, %p40
    %s42 = ssub.s32 %s8, %s15
    %p43 = scmp.eq.s32.totalorder %s42, 0
    %s45 = sadd.s32 %s44, 1
    %s46 = scalar_select %p43, %s44, %s45
    %p49 = pneg %p43
    %p50 = scmp.eq.s32.totalorder %s8, 1
    %p51 = por %p49, %p50
    %p52 = scmp.ne.s32.totalorder %s44, %s47
    %p53 = scmp.eq.s32.totalorder %s8, 0
    %p54 = por %p52, %p53
    %p55 = scmp.ne.s32.totalorder %s44, %s47
    %p56 = scmp.eq.s32.totalorder %s13, 1
    %p57 = por %p55, %p56
    %p58 = scmp.ne.s32.totalorder %s47, %s48
    %p59 = scmp.eq.s32.totalorder %s13, 0
    %p60 = por %p58, %p59
    %p61 = scmp.ne.s32.totalorder %s47, %s48
    %p62 = scmp.eq.s32.totalorder %s14, 1
    %p63 = por %p61, %p62
    %p65 = scmp.ne.s32.totalorder %s48, %s64
    %p66 = scmp.eq.s32.totalorder %s14, 0
    %p67 = por %p65, %p66
    %s68 = ssub.s32 %s8, %s15
    %p69 = scmp.eq.s32.totalorder %s68, 0
    %s71 = sadd.s32 %s70, 1
    %s72 = scalar_select %p69, %s70, %s71
    %p75 = pneg %p69
    %p76 = scmp.eq.s32.totalorder %s8, 1
    %p77 = por %p75, %p76
    %p78 = scmp.ne.s32.totalorder %s70, %s73
    %p79 = scmp.eq.s32.totalorder %s8, 0
    %p80 = por %p78, %p79
    %p81 = scmp.ne.s32.totalorder %s70, %s73
    %p82 = scmp.eq.s32.totalorder %s13, 1
    %p83 = por %p81, %p82
    %p84 = scmp.ne.s32.totalorder %s73, %s74
    %p85 = scmp.eq.s32.totalorder %s13, 0
    %p86 = por %p84, %p85
    %p87 = scmp.ne.s32.totalorder %s73, %s74
    %p88 = scmp.eq.s32.totalorder %s14, 1
    %p89 = por %p87, %p88
    %p91 = scmp.ne.s32.totalorder %s74, %s90
    %p92 = scmp.eq.s32.totalorder %s14, 0
    %p93 = por %p91, %p92
    %p94 = scmp.le.s32.totalorder 1, %s8
    %p95 = scmp.lt.s32.totalorder %s8, 3
    %p96 = pnand %p94, %p95
    %p97 = pneg %p96
    // Predicated region
    $region9: #{eca_forward.1} parent=5 // pred_check
      _
    $region10: #{eca_forward.1} parent=5 // pred_check_branch
      %99 = sbr.rel (%p96) target = $region12
    $region11: #{eca_forward.1} parent=5 // pred_region
      %s100 = ssub.s32 %s8, 1
    $region12: #{eca_forward.1} parent=5 // pred_fallthru
      _
    %p101 = scmp.lt.s32.totalorder %s8, 2
    // Predicated region
    $region13: #{eca_forward.1} parent=5 // pred_check
      %p102 = pneg %p101
    $region14: #{eca_forward.1} parent=5 // pred_check_branch
      %104 = sbr.rel (%p102) target = $region16
    $region15: #{eca_forward.1} parent=5 // pred_region
      // Predicated region
      $region17: #{eca_forward.1} parent=15 // pred_check
        %p105 = pneg %p28
      $region18: #{eca_forward.1} parent=15 // pred_check_branch
        %107 = sbr.rel (%p105) target = $region20
      $region19: #{eca_forward.1} parent=15 // pred_region
        %s108 = smul.u32 4, %s8
        %p109 = scmp.lt.s32.totalorder %s108, 7
        %s110 = scalar_select %p109, %s108, 7
        %s111 = smul.addr %s110, 2
        %s112 = smul.addr %s111, 8
        %s113 = scalar_lea.vmem %s0, %s112
        %s114 = smul.u32 4, %s8
      $region20: #{eca_forward.1} parent=15 // pred_fallthru
        _
      // Predicated region
      $region21: #{eca_forward.1} parent=15 // pred_check
        %p115 = pneg %p54
      $region22: #{eca_forward.1} parent=15 // pred_check_branch
        %117 = sbr.rel (%p115) target = $region24
      $region23: #{eca_forward.1} parent=15 // pred_region
        %s118 = smul.u32 4, %s8
        %p119 = scmp.lt.s32.totalorder %s118, 7
        %s120 = scalar_select %p119, %s118, 7
        %s121 = smul.addr %s120, 8
        %s122 = scalar_lea.vmem %s1, %s121
        %s123 = smul.u32 4, %s8
      $region24: #{eca_forward.1} parent=15 // pred_fallthru
        _
    $region16: #{eca_forward.1} parent=5 // pred_fallthru
      _
    %p124 = scmp.le.s32.totalorder 1, %s8
    %p125 = scmp.lt.s32.totalorder %s8, 3
    %p126 = pnand %p124, %p125
    %p127 = pneg %p126
    // Predicated region
    $region25: #{eca_forward.1} parent=5 // pred_check
      _
    $region26: #{eca_forward.1} parent=5 // pred_check_branch
      %129 = sbr.rel (%p126) target = $region28
    $region27: #{eca_forward.1} parent=5 // pred_region
      %s130 = ssub.s32 %s8, 1
      %s131 = smul.u32 4, %s13
      %p132 = scmp.lt.s32.totalorder %s131, 7
      %s133 = scalar_select %p132, %s131, 7
      %s134 = smul.addr %s133, 2
      %s135 = smul.addr %s134, 8
      %s136 = scalar_lea.vmem %s0, %s135
      %p137 = pneg %p34
      %p138 = pneg %p31
      %s139 = smul.u32 4, %s13
      %p140 = scmp.lt.s32.totalorder %s139, 7
      %s141 = scalar_select %p140, %s139, 7
      %s142 = smul.addr %s141, 8
      %s143 = scalar_lea.vmem %s1, %s142
      %p144 = pneg %p60
      %p145 = pneg %p57
      %p146 = pneg %p86
      %p147 = pneg %p83
      %s148 = smul.u32 4, %s13
      %p149 = scmp.lt.s32.totalorder %s148, 7
      %s150 = scalar_select %p149, %s148, 7
      %s151 = smul.addr %s150, 2
      %s152 = smul.addr %s151, 8
      %s153 = scalar_lea.vmem %s2, %s152
      %s154 = smul.u32 4, %s13
      %p155 = scmp.lt.s32.totalorder %s154, 7
      %s156 = scalar_select %p155, %s154, 7
      %s157 = smul.addr %s156, 2
      %s158 = smul.addr %s157, 8
      %s159 = scalar_lea.vmem %s0, %s158
      %s160 = smul.u32 4, %s13
      %s161 = smul.u32 4, %s13
      %p162 = scmp.lt.s32.totalorder %s161, 7
      %s163 = scalar_select %p162, %s161, 7
      %s164 = smul.addr %s163, 8
      %s165 = scalar_lea.vmem %s1, %s164
      %s166 = smul.u32 4, %s13
      %s167 = smul.u32 4, %s13
      %p168 = scmp.lt.s32.totalorder %s167, 7
      %s169 = scalar_select %p168, %s167, 7
      %s170 = smul.addr %s169, 2
      %s171 = smul.addr %s170, 8
      %s172 = scalar_lea.vmem %s2, %s171
      %s173 = smul.u32 4, %s13
      %v174 = vld [vmem:[%s159] sm:$0xff]
      %v175 = vld [vmem:[%s159 + $0x8] sm:$0xff]
      %v176 = vld [vmem:[%s159 + $0x10] sm:$0xff]
      %v177 = vld [vmem:[%s159 + $0x18] sm:$0xff]
      %v178 = vld [vmem:[%s159 + $0x20] sm:$0xff]
      %v179 = vld [vmem:[%s159 + $0x28] sm:$0xff]
      %v180 = vld [vmem:[%s159 + $0x30] sm:$0xff]
      %v181 = vld [vmem:[%s159 + $0x38] sm:$0xff]
      %v182 = vadd.f32 %v174, %v175
      %183 = vadd.xlane.f32.xlu0 %v182
      %v184 = vpop.xlane.xlu0 %183
      %v185 = vadd.f32 %v176, %v177
      %186 = vadd.xlane.f32.xlu0 %v185
      %v187 = vpop.xlane.xlu0 %186
      %v188 = vadd.f32 %v178, %v179
      %189 = vadd.xlane.f32.xlu0 %v188
      %v190 = vpop.xlane.xlu0 %189
      %v191 = vadd.f32 %v180, %v181
      %192 = vadd.xlane.f32.xlu0 %v191
      %v193 = vpop.xlane.xlu0 %192
      %v194 = vmul.f32 %v184, 0.00390625
      %v195 = vmul.f32 %v187, 0.00390625
      %v196 = vmul.f32 %v190, 0.00390625
      %v197 = vmul.f32 %v193, 0.00390625
      %v198 = vld [vmem:[%s165] sm:$0xff]
      %v199 = vld [vmem:[%s165 + $0x8] sm:$0xff]
      %v200 = vld [vmem:[%s165 + $0x10] sm:$0xff]
      %v201 = vld [vmem:[%s165 + $0x18] sm:$0xff]
      %v202 = vmul.f32 %v194, %v198
      %v203 = vmul.f32 %v195, %v199
      %v204 = vmul.f32 %v196, %v200
      %v205 = vmul.f32 %v197, %v201
      %v206 = vxor.u32 %v202, 2147483648
      %v207 = vxor.u32 %v203, 2147483648
      %v208 = vxor.u32 %v204, 2147483648
      %v209 = vxor.u32 %v205, 2147483648
      %v210 = vmul.f32 %v206, 1.442695
      %v211 = vpow.pop %v210
      %v212 = vmul.f32 %v207, 1.442695
      %v213 = vpow.pop %v212
      %v214 = vmul.f32 %v208, 1.442695
      %v215 = vpow.pop %v214
      %v216 = vmul.f32 %v209, 1.442695
      %v217 = vpow.pop %v216
      %v218 = vadd.f32 %v211, 1.0
      %v219 = vadd.f32 %v213, 1.0
      %v220 = vadd.f32 %v215, 1.0
      %v221 = vadd.f32 %v217, 1.0
      %v222 = vrcp.pop %v218
      %v223 = vmul.f32 1.0, %v222
      %v224 = vrcp.pop %v219
      %v225 = vmul.f32 1.0, %v224
      %v226 = vrcp.pop %v220
      %v227 = vmul.f32 1.0, %v226
      %v228 = vrcp.pop %v221
      %v229 = vmul.f32 1.0, %v228
      %231 = vset.pattern.permute.xlu0 0
      %232 = vperm.xlu0 %231, %v223
      %v233 = vpop.permute.xlu0 %232
      %236 = vset.pattern.permute.xlu0 0
      %237 = vperm.xlu0 %236, %v225
      %v238 = vpop.permute.xlu0 %237
      %241 = vset.pattern.permute.xlu0 0
      %242 = vperm.xlu0 %241, %v227
      %v243 = vpop.permute.xlu0 %242
      %246 = vset.pattern.permute.xlu0 0
      %247 = vperm.xlu0 %246, %v229
      %v248 = vpop.permute.xlu0 %247
      %v250 = vmul.f32 %v174, %v233
      %v251 = vmul.f32 %v175, %v233
      %v252 = vmul.f32 %v176, %v238
      %v253 = vmul.f32 %v177, %v238
      %v254 = vmul.f32 %v178, %v243
      %v255 = vmul.f32 %v179, %v243
      %v256 = vmul.f32 %v180, %v248
      %v257 = vmul.f32 %v181, %v248
      %258 = vst [vmem:[%s172] sm:$0xff] %v250
      %259 = vst [vmem:[%s172 + $0x8] sm:$0xff] %v251
      %260 = vst [vmem:[%s172 + $0x10] sm:$0xff] %v252
      %261 = vst [vmem:[%s172 + $0x18] sm:$0xff] %v253
      %262 = vst [vmem:[%s172 + $0x20] sm:$0xff] %v254
      %263 = vst [vmem:[%s172 + $0x28] sm:$0xff] %v255
      %264 = vst [vmem:[%s172 + $0x30] sm:$0xff] %v256
      %265 = vst [vmem:[%s172 + $0x38] sm:$0xff] %v257
      %s266 = smul.u32 4, %s13
      %p267 = scmp.lt.s32.totalorder %s266, 7
      %s268 = scalar_select %p267, %s266, 7
      %s269 = smul.addr %s268, 2
      %s270 = smul.addr %s269, 8
      %s271 = scalar_lea.vmem %s2, %s270
      // Predicated region
      $region29: #{eca_forward.1} parent=27 // pred_check
        %p272 = pneg %p83
      $region30: #{eca_forward.1} parent=27 // pred_check_branch
        %274 = sbr.rel (%p272) target = $region32
      $region31: #{eca_forward.1} parent=27 // pred_region
        %s275 = smul.u32 4, %s13
      $region32: #{eca_forward.1} parent=27 // pred_fallthru
        _
    $region28: #{eca_forward.1} parent=5 // pred_fallthru
      _
    %p276 = scmp.le.s32.totalorder 2, %s8
    // Predicated region
    $region33: #{eca_forward.1} parent=5 // pred_check
      %p277 = pneg %p276
    $region34: #{eca_forward.1} parent=5 // pred_check_branch
      %279 = sbr.rel (%p277) target = $region36
    $region35: #{eca_forward.1} parent=5 // pred_region
      %s280 = ssub.s32 %s8, 2
      // Predicated region
      $region37: #{eca_forward.1} parent=35 // pred_check
        %p281 = pneg %p89
      $region38: #{eca_forward.1} parent=35 // pred_check_branch
        %283 = sbr.rel (%p281) target = $region40
      $region39: #{eca_forward.1} parent=35 // pred_region
        %s284 = smul.u32 4, %s14
        %p285 = scmp.lt.s32.totalorder %s284, 7
        %s286 = scalar_select %p285, %s284, 7
        %s287 = smul.addr %s286, 2
        %s288 = smul.addr %s287, 8
        %s289 = scalar_lea.vmem %s2, %s288
      $region40: #{eca_forward.1} parent=35 // pred_fallthru
        _
    $region36: #{eca_forward.1} parent=5 // pred_fallthru
      _
  $region6: #{eca_forward.1} parent=0 // loop_footer
    %s12 = sadd.s32 1, %s8
  $region7: #{eca_forward.1} parent=0 // loop_footer_branch
    %7 = sbr.rel target = $region3
  $region8: #{eca_forward.1} parent=0 // loop_exit
    _

</llo_original>
